<compile_context>
chip_gen: v7x
topology: tpu7x:2x2x1
jax: 0.10.0
libtpu: 0.0.40
codegen_flags: <defaults>
</compile_context>

<pallas_src>
from functools import partial

import jax
import jax.numpy as jnp
from jax.experimental import pallas as pl
from jax.experimental.pallas import tpu as pltpu


def convdown_kernel(cols_ref, w_ref, o_ref, *, B, M, eps, slope, compute_dtype):
    """Fused Conv2d (as one im2col matmul) + InstanceNorm2d + LeakyReLU.

    cols_ref : (K, B*M)      im2col patch matrix, columns ordered (n, ho, wo)
    w_ref    : (C_out, K)    conv weights, K ordered (c_in, kh, kw)
    o_ref    : (C_out, B*M)  lane-dense fused output
    """
    w = w_ref[...].astype(compute_dtype)
    cols = cols_ref[...].astype(compute_dtype)

    # Single MXU matmul, K = C_in*KH*KW contraction, f32 accumulation.
    acc = jnp.dot(w, cols, preferred_element_type=jnp.float32)  # (C_out, B*M)

    # InstanceNorm2d (affine=False) + LeakyReLU, per sample on its M lanes.
    pieces = []
    for n in range(B):  # static unroll over the (small) batch tile
        y = acc[:, n * M:(n + 1) * M]                              # (C_out, M)
        mean = jnp.mean(y, axis=1, keepdims=True)                  # (C_out, 1)
        var = jnp.mean(jnp.square(y - mean), axis=1, keepdims=True)  # biased
        y = (y - mean) * jax.lax.rsqrt(var + eps)
        y = jnp.where(y >= 0, y, slope * y)                        # LeakyReLU
        pieces.append(y)

    out = pieces[0] if B == 1 else jnp.concatenate(pieces, axis=1)
    o_ref[...] = out.astype(o_ref.dtype)


def convdown_forward(x_nchw, w_oihw, *, stride=2, padding=1, eps=1e-5,
                     slope=0.2, compute_dtype=jnp.float32):
    """Wrapper: NCHW in -> NCHW out (PyTorch convention)."""
    N, C_in, H, W = x_nchw.shape
    C_out, C_in_w, KH, KW = w_oihw.shape
    assert C_in_w == C_in
    Ho = (H + 2 * padding - KH) // stride + 1
    Wo = (W + 2 * padding - KW) // stride + 1
    M = Ho * Wo
    K = C_in * KH * KW

    # --- wrapper-side im2col (XLA glue, outside the kernel) -----------------
    xp = jnp.pad(x_nchw, ((0, 0), (0, 0),
                          (padding, padding), (padding, padding)))
    slabs = []
    for kh in range(KH):
        for kw in range(KW):
            slabs.append(xp[:, :,
                            kh:kh + stride * (Ho - 1) + 1:stride,
                            kw:kw + stride * (Wo - 1) + 1:stride])  # (N,Ci,Ho,Wo)
    p = jnp.stack(slabs, axis=2)                 # (N, C_in, KH*KW, Ho, Wo)
    p = p.reshape(N, K, M)                       # K ordered (c_in, kh, kw)
    cols = jnp.transpose(p, (1, 0, 2)).reshape(K, N * M)  # cols ordered (n,ho,wo)

    # Weights pre-reshaped to 2-D with the same K ordering.
    w2d = w_oihw.reshape(C_out, K)               # (C_out, K)

    kernel = partial(convdown_kernel, B=N, M=M, eps=eps, slope=slope,
                     compute_dtype=compute_dtype)

    out_t = pl.pallas_call(
        kernel,
        out_shape=jax.ShapeDtypeStruct((C_out, N * M), x_nchw.dtype),
        grid=(1,),
        in_specs=[
            pl.BlockSpec((K, N * M), lambda i: (0, 0)),
            pl.BlockSpec((C_out, K), lambda i: (0, 0)),
        ],
        out_specs=pl.BlockSpec((C_out, N * M), lambda i: (0, 0)),
        compiler_params=pltpu.CompilerParams(
            dimension_semantics=("arbitrary",)),
    )(cols, w2d)

    # (C_out, N*Ho*Wo) -> (N, C_out, Ho, Wo)   (cheap XLA-side layout glue)
    out = out_t.reshape(C_out, N, Ho, Wo)
    return jnp.transpose(out, (1, 0, 2, 3))


def convdown_reference(x_nchw, w_oihw, *, stride=2, padding=1,
                       eps=1e-5, slope=0.2):
    """Pure-JAX reference of the same Conv2d -> InstanceNorm2d -> LeakyReLU."""
    y = jax.lax.conv_general_dilated(
        x_nchw, w_oihw,
        window_strides=(stride, stride),
        padding=((padding, padding), (padding, padding)),
        dimension_numbers=("NCHW", "OIHW", "NCHW"))
    mean = jnp.mean(y, axis=(2, 3), keepdims=True)
    var = jnp.mean((y - mean) ** 2, axis=(2, 3), keepdims=True)
    y = (y - mean) / jnp.sqrt(var + eps)
    return jnp.where(y >= 0, y, slope * y)


if __name__ == "__main__":
    key = jax.random.PRNGKey(0)
    k_x, k_w = jax.random.split(key)

    # ConvDown(in_c=4, out_c=8, kernel=4, stride=2, padding=1, layers=1)
    N, C_in, H, W = 2, 4, 16, 16
    C_out, KH, KW = 2 * C_in, 4, 4

    x = jax.random.normal(k_x, (N, C_in, H, W), dtype=jnp.float32)
    w = 0.1 * jax.random.normal(k_w, (C_out, C_in, KH, KW), dtype=jnp.float32)

    out = convdown_forward(x, w, stride=2, padding=1)
    out = jax.block_until_ready(out)

    ref = convdown_reference(x, w, stride=2, padding=1)
    assert out.shape == (N, C_out, 8, 8), out.shape
    assert jnp.allclose(out, ref, atol=1e-4, rtol=1e-4), \
        float(jnp.max(jnp.abs(out - ref)))

    print("KERNEL_OK")
</pallas_src>

<mosaic_0001>
module attributes {stable_mosaic.version = 11 : i64} {
  func.func @convdown_kernel(%arg0: i32, %arg1: memref<64x128xf32, #tpu.memory_space<vmem>>, %arg2: memref<8x64xf32, #tpu.memory_space<vmem>>, %arg3: memref<8x128xf32, #tpu.memory_space<vmem>>) attributes {dimension_semantics = [#tpu.dimension_semantics<arbitrary>], iteration_bounds = array<i64: 1>, scalar_prefetch = 0 : i64, scratch_operands = 0 : i64, tpu.core_type = #tpu.core_type<tc>, window_params = [{pipeline_mode = #tpu.pipeline_mode<synchronous>, transform_indices = @transform_0, window_bounds = array<i64: 64, 128>}, {pipeline_mode = #tpu.pipeline_mode<synchronous>, transform_indices = @transform_1, window_bounds = array<i64: 8, 64>}, {pipeline_mode = #tpu.pipeline_mode<synchronous>, transform_indices = @transform_2, window_bounds = array<i64: 8, 128>}]} {
    %c0 = arith.constant 0 : index
    %c0_0 = arith.constant 0 : index
    %0 = vector.load %arg2[%c0, %c0_0] : memref<8x64xf32, #tpu.memory_space<vmem>>, vector<8x64xf32>
    %c0_1 = arith.constant 0 : index
    %c0_2 = arith.constant 0 : index
    %1 = vector.load %arg1[%c0_1, %c0_2] : memref<64x128xf32, #tpu.memory_space<vmem>>, vector<64x128xf32>
    %cst = arith.constant dense<0.000000e+00> : vector<8x128xf32>
    %2 = tpu.matmul %0, %1, %cst {dimension_numbers = #tpu.dot_dimension_numbers<[1], [0], [0], [1], [0, 0, 1, 1], [], []>} : vector<8x64xf32>, vector<64x128xf32>, vector<8x128xf32> -> vector<8x128xf32>
    %3 = vector.extract_strided_slice %2 {offsets = [0, 0], sizes = [8, 64], strides = [1, 1]} : vector<8x128xf32> to vector<8x64xf32>
    %cst_3 = arith.constant dense<0.000000e+00> : vector<8xf32>
    %4 = vector.multi_reduction <add>, %3, %cst_3 [1] : vector<8x64xf32> to vector<8xf32>
    %5 = vector.shape_cast %4 : vector<8xf32> to vector<8x1xf32>
    %cst_4 = arith.constant 6.400000e+01 : f32
    %6 = vector.broadcast %cst_4 : f32 to vector<8x1xf32>
    %7 = arith.divf %5, %6 : vector<8x1xf32>
    %8 = vector.broadcast %7 : vector<8x1xf32> to vector<8x64xf32>
    %9 = arith.subf %3, %8 : vector<8x64xf32>
    %10 = arith.mulf %9, %9 : vector<8x64xf32>
    %cst_5 = arith.constant dense<0.000000e+00> : vector<8xf32>
    %11 = vector.multi_reduction <add>, %10, %cst_5 [1] : vector<8x64xf32> to vector<8xf32>
    %12 = vector.shape_cast %11 : vector<8xf32> to vector<8x1xf32>
    %cst_6 = arith.constant 6.400000e+01 : f32
    %13 = vector.broadcast %cst_6 : f32 to vector<8x1xf32>
    %14 = arith.divf %12, %13 : vector<8x1xf32>
    %15 = vector.broadcast %7 : vector<8x1xf32> to vector<8x64xf32>
    %16 = arith.subf %3, %15 : vector<8x64xf32>
    %cst_7 = arith.constant 9.99999974E-6 : f32
    %17 = vector.broadcast %cst_7 : f32 to vector<8x1xf32>
    %18 = arith.addf %14, %17 : vector<8x1xf32>
    %19 = math.rsqrt %18 : vector<8x1xf32>
    %20 = vector.broadcast %19 : vector<8x1xf32> to vector<8x64xf32>
    %21 = arith.mulf %16, %20 : vector<8x64xf32>
    %cst_8 = arith.constant 0.000000e+00 : f32
    %22 = vector.broadcast %cst_8 : f32 to vector<8x64xf32>
    %23 = arith.cmpf oge, %21, %22 : vector<8x64xf32>
    %cst_9 = arith.constant 2.000000e-01 : f32
    %24 = vector.broadcast %cst_9 : f32 to vector<8x64xf32>
    %25 = arith.mulf %24, %21 : vector<8x64xf32>
    %26 = arith.select %23, %21, %25 : vector<8x64xi1>, vector<8x64xf32>
    %27 = vector.extract_strided_slice %2 {offsets = [0, 64], sizes = [8, 64], strides = [1, 1]} : vector<8x128xf32> to vector<8x64xf32>
    %cst_10 = arith.constant dense<0.000000e+00> : vector<8xf32>
    %28 = vector.multi_reduction <add>, %27, %cst_10 [1] : vector<8x64xf32> to vector<8xf32>
    %29 = vector.shape_cast %28 : vector<8xf32> to vector<8x1xf32>
    %cst_11 = arith.constant 6.400000e+01 : f32
    %30 = vector.broadcast %cst_11 : f32 to vector<8x1xf32>
    %31 = arith.divf %29, %30 : vector<8x1xf32>
    %32 = vector.broadcast %31 : vector<8x1xf32> to vector<8x64xf32>
    %33 = arith.subf %27, %32 : vector<8x64xf32>
    %34 = arith.mulf %33, %33 : vector<8x64xf32>
    %cst_12 = arith.constant dense<0.000000e+00> : vector<8xf32>
    %35 = vector.multi_reduction <add>, %34, %cst_12 [1] : vector<8x64xf32> to vector<8xf32>
    %36 = vector.shape_cast %35 : vector<8xf32> to vector<8x1xf32>
    %cst_13 = arith.constant 6.400000e+01 : f32
    %37 = vector.broadcast %cst_13 : f32 to vector<8x1xf32>
    %38 = arith.divf %36, %37 : vector<8x1xf32>
    %39 = vector.broadcast %31 : vector<8x1xf32> to vector<8x64xf32>
    %40 = arith.subf %27, %39 : vector<8x64xf32>
    %cst_14 = arith.constant 9.99999974E-6 : f32
    %41 = vector.broadcast %cst_14 : f32 to vector<8x1xf32>
    %42 = arith.addf %38, %41 : vector<8x1xf32>
    %43 = math.rsqrt %42 : vector<8x1xf32>
    %44 = vector.broadcast %43 : vector<8x1xf32> to vector<8x64xf32>
    %45 = arith.mulf %40, %44 : vector<8x64xf32>
    %cst_15 = arith.constant 0.000000e+00 : f32
    %46 = vector.broadcast %cst_15 : f32 to vector<8x64xf32>
    %47 = arith.cmpf oge, %45, %46 : vector<8x64xf32>
    %cst_16 = arith.constant 2.000000e-01 : f32
    %48 = vector.broadcast %cst_16 : f32 to vector<8x64xf32>
    %49 = arith.mulf %48, %45 : vector<8x64xf32>
    %50 = arith.select %47, %45, %49 : vector<8x64xi1>, vector<8x64xf32>
    %51 = tpu.concatenate %26, %50 in 1 : vector<8x64xf32>, vector<8x64xf32> -> vector<8x128xf32>
    %c0_17 = arith.constant 0 : index
    %c0_18 = arith.constant 0 : index
    %52 = vector.load %arg3[%c0_17, %c0_18] : memref<8x128xf32, #tpu.memory_space<vmem>>, vector<8x128xf32>
    tpu.vector_store %arg3[%c0_17, %c0_18], %51 {strides = array<i32>} : memref<8x128xf32, #tpu.memory_space<vmem>>, vector<8x128xf32>,
    return
  }
  func.func @transform_0(%arg0: i32) -> (i32, i32) {
    %c0_i32 = arith.constant 0 : i32
    %c0_i32_0 = arith.constant 0 : i32
    %c0_i32_1 = arith.constant 0 : i32
    return %c0_i32, %c0_i32_0 : i32, i32
  }
  func.func @transform_1(%arg0: i32) -> (i32, i32) {
    %c0_i32 = arith.constant 0 : i32
    %c0_i32_0 = arith.constant 0 : i32
    %c0_i32_1 = arith.constant 0 : i32
    return %c0_i32, %c0_i32_0 : i32, i32
  }
  func.func @transform_2(%arg0: i32) -> (i32, i32) {
    %c0_i32 = arith.constant 0 : i32
    %c0_i32_0 = arith.constant 0 : i32
    %c0_i32_1 = arith.constant 0 : i32
    return %c0_i32, %c0_i32_0 : i32, i32
  }
}

</mosaic_0001>

<llo_original>
// kernel: tpu_custom_call.1
$region0: #{tpu_custom_call.1}
  #allocation0 [shape = 'u32[]', space=smem, size = 0x4, offset = 0x4, fixed_abs, tag = 'smem constant byte address 0x4 - core index']
  #allocation1 [shape = 'u32[144,128]{1,0:T(1,128)}', space=vmem, size = 0x12000, scoped, tag = 'internal scratch']
  %s0 = inlined_call_operand.hbm [shape: f32[64,128], index: 0, kind: input, shape index: {}]
  %s1 = inlined_call_operand.hbm [shape: f32[8,64], index: 1, kind: input, shape index: {}]
  %s2 = inlined_call_operand.hbm [shape: f32[8,128], index: 2, kind: output, shape index: {}]
  %s3 = sld [smem:[#allocation0]]
  $region26: #{tpu_custom_call.1} parent=0
    _
  %s5 = ssub.s32 1, %s3
  %s6 = scalar_select 0, %s5, %s3
  $region1: #{tpu_custom_call.1} parent=0
    #allocation2 [shape = 'u8[32768]{0}', space=vmem, size = 0x8000, scoped, tag = 'input window, operand 0, single buffered']
    #allocation3 [shape = 's32[1]{0}', space=sflag, size = 0x4, scoped, tag = 'scoped memory for tpu_custom_call.1']
    #allocation4 [shape = 's32[1]{0}', space=sflag, size = 0x4, scoped, tag = 'scoped memory for tpu_custom_call.1']
    #allocation5 [shape = 'u8[4096]{0}', space=vmem, size = 0x1000, scoped, tag = 'input window, operand 1, single buffered']
    #allocation6 [shape = 's32[1]{0}', space=sflag, size = 0x4, scoped, tag = 'scoped memory for tpu_custom_call.1']
    #allocation7 [shape = 'u8[4096]{0}', space=vmem, size = 0x1000, scoped, tag = 'output window, operand 0, single buffered']
    %7 = vsyncpa [#allocation3], 0
    %8 = vsyncpa [#allocation6], 0
    %9 = vsyncpa [#allocation4], 0
    // Predicated region
    $region2: #{tpu_custom_call.1} parent=1 // pred_check
      _
    $region3: #{tpu_custom_call.1} parent=1 // pred_check_branch
      %11 = sbr.rel (0) target = $region5
    $region4: #{tpu_custom_call.1} parent=1 // pred_region
      %s13 = ssub.s32 1024, 1024
      %14 = vsyncadd [#allocation3], %s13
      %s15 = sshll.u32 [#allocation2], 4
      %s16 = int_to_ptr.vmem [resolvable:$true] %s15
      %21 = dma.hbm_to_vmem [thread:$0]  %s0, 1024, %s16, [#allocation3], 128, 128, 8
    $region5: #{tpu_custom_call.1} parent=1 // pred_fallthru
      _
    // Predicated region
    $region6: #{tpu_custom_call.1} parent=1 // pred_check
      _
    $region7: #{tpu_custom_call.1} parent=1 // pred_check_branch
      %23 = sbr.rel (0) target = $region9
    $region8: #{tpu_custom_call.1} parent=1 // pred_region
      %s25 = ssub.s32 128, 128
      %26 = vsyncadd [#allocation6], %s25
      %s28 = sshll.u32 [#allocation5], 4
      %s29 = int_to_ptr.vmem [resolvable:$true] %s28
      %31 = dma.hbm_to_vmem [thread:$0]  %s1, 128, %s29, [#allocation6]
    $region9: #{tpu_custom_call.1} parent=1 // pred_fallthru
      _
    // Predicated region
    $region10: #{tpu_custom_call.1} parent=1 // pred_check
      _
    $region11: #{tpu_custom_call.1} parent=1 // pred_check_branch
      %33 = sbr.rel (0) target = $region13
    $region12: #{tpu_custom_call.1} parent=1 // pred_region
      %34 = dma.done [#allocation3], 1024
    $region13: #{tpu_custom_call.1} parent=1 // pred_fallthru
      _
    // Predicated region
    $region14: #{tpu_custom_call.1} parent=1 // pred_check
      _
    $region15: #{tpu_custom_call.1} parent=1 // pred_check_branch
      %36 = sbr.rel (0) target = $region17
    $region16: #{tpu_custom_call.1} parent=1 // pred_region
      %37 = dma.done [#allocation6], 128
    $region17: #{tpu_custom_call.1} parent=1 // pred_fallthru
      _
    %v38 = vld [vmem:[#allocation5] sm:$0xff]
    %v39 = vld [vmem:[#allocation2] sm:$0xff]
    %v40 = vld [vmem:[#allocation2 + $0x8] sm:$0xff]
    %v41 = vld [vmem:[#allocation2 + $0x10] sm:$0xff]
    %v42 = vld [vmem:[#allocation2 + $0x18] sm:$0xff]
    %v43 = vld [vmem:[#allocation2 + $0x20] sm:$0xff]
    %v44 = vld [vmem:[#allocation2 + $0x28] sm:$0xff]
    %v45 = vld [vmem:[#allocation2 + $0x30] sm:$0xff]
    %v46 = vld [vmem:[#allocation2 + $0x38] sm:$0xff]
    %vm47 = vcmask 523264
    %v49 = vsel %vm47, %v38, 0
    %51 = vmatprep.subr.mxu0 0.0
    %52 = vmatpush1.msra.mxu0 %v39
    %53 = vmatprep.subr.mxu0 0.0
    %54 = vmatpush1.msra.mxu0 %v40
    %55 = vmatprep.subr.mxu0 0.0
    %56 = vmatpush1.msra.mxu0 %v41
    %57 = vmatprep.subr.mxu0 0.0
    %58 = vmatpush1.msra.mxu0 %v42
    %59 = vmatprep.subr.mxu0 0.0
    %60 = vmatpush1.msra.mxu0 %v43
    %61 = vmatprep.subr.mxu0 0.0
    %62 = vmatpush1.msra.mxu0 %v44
    %63 = vmatprep.subr.mxu0 0.0
    %64 = vmatpush1.msra.mxu0 %v45
    %65 = vmatprep.subr.mxu0 0.0
    %66 = vmatpush1.msra.mxu0 %v46
    %67 = vmatprep.subr.mxu0 0.0
    %68 = vmatpush1.msra.mxu0 0.0
    %69 = vmatprep.subr.mxu0 0.0
    %70 = vmatpush1.msra.mxu0 0.0
    %71 = vmatprep.subr.mxu0 0.0
    %72 = vmatpush1.msra.mxu0 0.0
    %73 = vmatprep.subr.mxu0 0.0
    %74 = vmatpush1.msra.mxu0 0.0
    %75 = vmatprep.subr.mxu0 0.0
    %76 = vmatpush1.msra.mxu0 0.0
    %77 = vmatprep.subr.mxu0 0.0
    %78 = vmatpush1.msra.mxu0 0.0
    %79 = vmatprep.subr.mxu0 0.0
    %80 = vmatpush1.msra.mxu0 0.0
    %81 = vmatprep.subr.mxu0 0.0
    %82 = vmatpush1.msra.mxu0 0.0
    %83 = vmatprep.subr.mxu0 0.0
    %84 = vmatpush1.msra.mxu0 0.0
    %85 = vmatprep.subr.mxu0 0.0
    %86 = vmatpush1.msra.mxu0 0.0
    %87 = vmatprep.subr.mxu0 0.0
    %88 = vmatpush1.msra.mxu0 0.0
    %89 = vmatprep.subr.mxu0 0.0
    %90 = vmatpush1.msra.mxu0 0.0
    %91 = vmatprep.subr.mxu0 0.0
    %92 = vmatpush1.msra.mxu0 0.0
    %93 = vmatprep.subr.mxu0 0.0
    %94 = vmatpush1.msra.mxu0 0.0
    %95 = vmatprep.subr.mxu0 0.0
    %96 = vmatpush1.msra.mxu0 0.0
    %97 = vmatprep.subr.mxu0 0.0
    %98 = vmatpush1.msra.mxu0 0.0
    %99 = vmatprep.subr.mxu0 0.0
    %100 = vmatpush1.msra.mxu0 0.0
    %101 = vmatprep.subr.mxu0 0.0
    %102 = vmatpush1.msra.mxu0 0.0
    %103 = vmatprep.subr.mxu0 0.0
    %104 = vmatpush1.msra.mxu0 0.0
    %105 = vmatprep.subr.mxu0 0.0
    %106 = vmatpush1.msra.mxu0 0.0
    %107 = vmatprep.subr.mxu0 0.0
    %108 = vmatpush1.msra.mxu0 0.0
    %109 = vmatprep.subr.mxu0 0.0
    %110 = vmatpush1.msra.mxu0 0.0
    %111 = vmatprep.subr.mxu0 0.0
    %112 = vmatpush1.msra.mxu0 0.0
    %113 = vmatprep.subr.mxu0 0.0
    %114 = vmatpush1.msra.mxu0 0.0
    %115 = vmatprep.mubr.f32.mxu0 0.0
    %116 = vmatmul.mubr.f32.gmra.mrb[0].mxu0 %v49
    %v117 = vpop.f32.mrb[0].mxu0
    %v118 = vadd.f32 0.0, %v117
    %v119 = vpop.f32.mrb[0].mxu0
    %120 = vdwg.mxu0
    %v121 = vsel %vm47, %v118, 0.0
    %122 = vadd.xlane.f32.xlu0 %v121
    %v123 = vpop.xlane.xlu0 %122
    %v124 = vrcp.pop 64.0
    %v125 = vmul.f32 %v123, %v124
    %v126 = vsub.f32 %v118, %v125
    %v127 = vmul.f32 %v126, %v126
    %v128 = vsel %vm47, %v127, 0.0
    %129 = vadd.xlane.f32.xlu0 %v128
    %v130 = vpop.xlane.xlu0 %129
    %v131 = vmul.f32 %v130, %v124
    %v132 = vadd.f32 %v131, 1e-05
    %v133 = vrsqrt.pop %v132
    %v134 = vmul.f32 %v126, %v133
    %vm135 = vcmp.ge.f32.partialorder %v134, 0.0
    %v136 = vmul.f32 %v134, 0.2
    %v137 = vsel %vm135, %v134, %v136
    %139 = vrot.lane.b32.xlu0 %v118, 64
    %v140 = vpop.permute.xlu0 %139
    %v142 = vsel %vm47, %v140, 0.0
    %143 = vadd.xlane.f32.xlu0 %v142
    %v144 = vpop.xlane.xlu0 %143
    %v145 = vmul.f32 %v144, %v124
    %v146 = vsub.f32 %v118, %v145
    %v147 = vmul.f32 %v146, %v146
    %149 = vrot.lane.b32.xlu0 %v147, 64
    %v150 = vpop.permute.xlu0 %149
    %v152 = vsel %vm47, %v150, 0.0
    %153 = vadd.xlane.f32.xlu0 %v152
    %v154 = vpop.xlane.xlu0 %153
    %v155 = vmul.f32 %v154, %v124
    %v156 = vadd.f32 %v155, 1e-05
    %v157 = vrsqrt.pop %v156
    %v158 = vmul.f32 %v146, %v157
    %vm159 = vcmp.ge.f32.partialorder %v158, 0.0
    %v160 = vmul.f32 %v158, 0.2
    %v161 = vsel %vm159, %v158, %v160
    %v162 = vsel %vm47, %v137, %v161
    %163 = vst [vmem:[#allocation7] sm:$0xff] %v162
    // Predicated region
    $region18: #{tpu_custom_call.1} parent=1 // pred_check
      _
    $region19: #{tpu_custom_call.1} parent=1 // pred_check_branch
      %165 = sbr.rel (0) target = $region21
    $region20: #{tpu_custom_call.1} parent=1 // pred_region
      %s167 = ssub.s32 128, 128
      %168 = vsyncadd [#allocation4], %s167
      %s170 = sshll.u32 [#allocation7], 4
      %s171 = int_to_ptr.vmem [resolvable:$true] %s170
      %173 = dma.vmem_to_hbm [thread:$0]  %s171, 128, %s2, [#allocation4]
    $region21: #{tpu_custom_call.1} parent=1 // pred_fallthru
      _
    // Predicated region
    $region22: #{tpu_custom_call.1} parent=1 // pred_check
      _
    $region23: #{tpu_custom_call.1} parent=1 // pred_check_branch
      %175 = sbr.rel (0) target = $region25
    $region24: #{tpu_custom_call.1} parent=1 // pred_region
      %176 = dma.done [#allocation4], 128
    $region25: #{tpu_custom_call.1} parent=1 // pred_fallthru
      _
    %177 = vsyncpa [#allocation3], 1
    %178 = vsyncpa [#allocation6], 1
    %179 = vsyncpa [#allocation4], 1

</llo_original>
